<compile_context>
chip_gen: v7x
topology: tpu7x:2x2x1
jax: 0.10.0
libtpu: 0.0.40
codegen_flags: <defaults>
</compile_context>

<pallas_src>
import jax
import jax.numpy as jnp
from jax.experimental import pallas as pl
from jax.experimental.pallas import tpu as pltpu

TRIM_H = 28
TRIM_W = 28

# Per-step scoped-VMEM byte budget for the double-buffered in+out blocks.
# Conservative vs the smallest scoped-VMEM default across generations
# (v5e: 16 MiB), leaving headroom for Mosaic's own scratch.
_VMEM_BUDGET_BYTES = 12 << 20
# Never shrink a grid step below this many planes (per-step overhead ~0.35 us).
_MIN_PLANES_PER_STEP = 16
# Target pipeline depth when there is enough work (overlap load/copy/store and
# feed both v7x TensorCores on the "parallel" plane axis).
_TARGET_STEPS = 8


def _round_up(x, m):
    return ((x + m - 1) // m) * m


def _in_extent(full, needed, align):
    """Smallest legal block extent >= `needed` along a tiled axis.

    Must be a multiple of `align` or equal to the full array extent.
    """
    if needed >= full:
        return full
    aligned = _round_up(needed, align)
    return aligned if aligned <= full else full


def _trim_kernel(x_ref, o_ref):
    # x_ref: (B, in_h, in_w) top-left window of each plane
    # o_ref: (B, out_h, out_w) trimmed output
    _, oh, ow = o_ref.shape
    o_ref[...] = x_ref[:, :oh, :ow]


def trim(x):
    """Pallas equivalent of `x[:, :, :28, :28]` for NCHW tensors."""
    N, C, H, W = x.shape
    # Match PyTorch slicing semantics: never exceed the actual extent.
    out_h = min(H, TRIM_H)
    out_w = min(W, TRIM_W)

    P = N * C
    xf = x.reshape(P, H, W)  # free, contiguous collapse of (N, C)

    # Only DMA the tile-aligned top-left window we actually need:
    #   sublane axis: 28 -> 32 (multiple of 8)
    #   lane axis:    28 -> 128 (or the full W when W < 128)
    in_h = _in_extent(H, out_h, 8)
    in_w = _in_extent(W, out_w, 128)

    itemsize = jnp.dtype(x.dtype).itemsize
    # Real VMEM footprint per plane, accounting for (8,128) tile padding of the
    # last two dims (e.g. a 28x28 f32 plane occupies a 32x128 VMEM tile =
    # 16 KiB, not 3.1 KiB).  x2 for double-buffering of each block.
    pad_in = _round_up(in_h, 8) * _round_up(in_w, 128)
    pad_out = _round_up(out_h, 8) * _round_up(out_w, 128)
    per_plane_bytes = (pad_in + pad_out) * itemsize * 2

    # Planes per grid step from the VMEM budget ...
    cap = max(1, _VMEM_BUDGET_BYTES // per_plane_bytes)
    # ... then deepen the pipeline when there is enough work: aim for at least
    # _TARGET_STEPS grid steps (>= 4 per core on v7x), but never drop below
    # _MIN_PLANES_PER_STEP planes per step.  Tiny problems stay at 1 step.
    if P >= _TARGET_STEPS * _MIN_PLANES_PER_STEP:
        cap = min(cap, pl.cdiv(P, _TARGET_STEPS))
    block_p = min(P, cap)
    # Near-even split so the last block barely overhangs P.
    steps = pl.cdiv(P, block_p)
    block_p = pl.cdiv(P, steps)
    grid = (pl.cdiv(P, block_p),)

    # Pure-memory-op hint for XLA's scheduler.
    cost = pl.CostEstimate(
        flops=0,
        transcendentals=0,
        bytes_accessed=int(P * (in_h * in_w + out_h * out_w) * itemsize),
    )

    out_flat = pl.pallas_call(
        _trim_kernel,
        out_shape=jax.ShapeDtypeStruct((P, out_h, out_w), x.dtype),
        grid=grid,
        in_specs=[
            pl.BlockSpec((block_p, in_h, in_w), lambda i: (i, 0, 0)),
        ],
        out_specs=pl.BlockSpec((block_p, out_h, out_w), lambda i: (i, 0, 0)),
        compiler_params=pltpu.CompilerParams(
            dimension_semantics=("parallel",),
        ),
        cost_estimate=cost,
    )(xf)

    return out_flat.reshape(N, C, out_h, out_w)


if __name__ == "__main__":
    key = jax.random.PRNGKey(0)
    # Small shape consistent with what the VAE decoder feeds into Trim:
    # NCHW with spatial dims a bit larger than 28.
    x = jax.random.normal(key, (2, 4, 32, 32), dtype=jnp.float32)

    out = jax.block_until_ready(trim(x))

    # Correctness vs. plain JAX slicing (same semantics as x[:, :, :28, :28]).
    ref = x[:, :, :TRIM_H, :TRIM_W]
    assert out.shape == (2, 4, 28, 28), out.shape
    assert out.dtype == x.dtype
    assert jnp.array_equal(out, ref)

    print("KERNEL_OK")
</pallas_src>

<mosaic_0001>
module attributes {stable_mosaic.version = 11 : i64} {
  func.func @_trim_kernel(%arg0: i32, %arg1: memref<8x32x32xf32, #tpu.memory_space<vmem>>, %arg2: memref<8x28x28xf32, #tpu.memory_space<vmem>>) attributes {dimension_semantics = [#tpu.dimension_semantics<parallel>], iteration_bounds = array<i64: 1>, scalar_prefetch = 0 : i64, scratch_operands = 0 : i64, tpu.core_type = #tpu.core_type<tc>, window_params = [{transform_indices = @transform_0, window_bounds = array<i64: 8, 32, 32>}, {transform_indices = @transform_1, window_bounds = array<i64: 8, 28, 28>}]} {
    %c0 = arith.constant 0 : index
    %c0_0 = arith.constant 0 : index
    %c0_1 = arith.constant 0 : index
    %0 = vector.load %arg1[%c0, %c0_0, %c0_1] : memref<8x32x32xf32, #tpu.memory_space<vmem>>, vector<8x28x28xf32>
    %c0_2 = arith.constant 0 : index
    %c0_3 = arith.constant 0 : index
    %c0_4 = arith.constant 0 : index
    %1 = vector.load %arg2[%c0_2, %c0_3, %c0_4] : memref<8x28x28xf32, #tpu.memory_space<vmem>>, vector<8x28x28xf32>
    tpu.vector_store %arg2[%c0_2, %c0_3, %c0_4], %0 {strides = array<i32>} : memref<8x28x28xf32, #tpu.memory_space<vmem>>, vector<8x28x28xf32>,
    return
  }
  func.func @transform_0(%arg0: i32) -> (i32, i32, i32) {
    %c0_i32 = arith.constant 0 : i32
    %c0_i32_0 = arith.constant 0 : i32
    %c0_i32_1 = arith.constant 0 : i32
    return %arg0, %c0_i32, %c0_i32_0 : i32, i32, i32
  }
  func.func @transform_1(%arg0: i32) -> (i32, i32, i32) {
    %c0_i32 = arith.constant 0 : i32
    %c0_i32_0 = arith.constant 0 : i32
    %c0_i32_1 = arith.constant 0 : i32
    return %arg0, %c0_i32, %c0_i32_0 : i32, i32, i32
  }
}

</mosaic_0001>

<llo_original>
// kernel: tpu_custom_call.1
$region0: #{tpu_custom_call.1}
  #allocation0 [shape = 'u32[]', space=smem, size = 0x4, offset = 0x4, fixed_abs, tag = 'smem constant byte address 0x4 - core index']
  #allocation1 [shape = 'u32[144,128]{1,0:T(1,128)}', space=vmem, size = 0x12000, scoped, tag = 'internal scratch']
  %s0 = inlined_call_operand.hbm [shape: f32[8,32,32], index: 0, kind: input, shape index: {}]
  %s1 = inlined_call_operand.vmem [shape: f32[8,28,28], index: 1, kind: output, shape index: {}]
  %s2 = sld [smem:[#allocation0]]
  $region18: #{tpu_custom_call.1} parent=0
    _
  %s4 = ssub.s32 1, %s2
  %s5 = scalar_select 0, %s4, %s2
  $region1: #{tpu_custom_call.1} parent=0
    #allocation2 [shape = 'u8[131072]{0}', space=vmem, size = 0x20000, scoped, tag = 'input window, operand 0, single buffered']
    #allocation3 [shape = 's32[1]{0}', space=sflag, size = 0x4, scoped, tag = 'scoped memory for tpu_custom_call.1']
    %6 = vsyncpa [#allocation3], 0
    // Predicated region
    $region2: #{tpu_custom_call.1} parent=1 // pred_check
      _
    $region3: #{tpu_custom_call.1} parent=1 // pred_check_branch
      %8 = sbr.rel (0) target = $region5
    $region4: #{tpu_custom_call.1} parent=1 // pred_region
      %s10 = ssub.s32 4096, 4096
      %11 = vsyncadd [#allocation3], %s10
      %s12 = sshll.u32 [#allocation2], 4
      %s13 = int_to_ptr.vmem [resolvable:$true] %s12
      %18 = dma.hbm_to_vmem [thread:$0]  %s0, 4096, %s13, [#allocation3], 128, 128, 8
    $region5: #{tpu_custom_call.1} parent=1 // pred_fallthru
      _
    // Predicated region
    $region6: #{tpu_custom_call.1} parent=1 // pred_check
      _
    $region7: #{tpu_custom_call.1} parent=1 // pred_check_branch
      %20 = sbr.rel (0) target = $region9
    $region8: #{tpu_custom_call.1} parent=1 // pred_region
      %21 = dma.done [#allocation3], 4096
    $region9: #{tpu_custom_call.1} parent=1 // pred_fallthru
      _
    %v22 = vld [vmem:[#allocation2] sm:$0xff]
    %v23 = vld [vmem:[#allocation2 + $0x8] sm:$0xff]
    %v24 = vld [vmem:[#allocation2 + $0x10] sm:$0xff]
    %v25 = vld [vmem:[#allocation2 + $0x18] sm:$0xf]
    %v26 = vld [vmem:[#allocation2 + $0x20] sm:$0xff]
    %v27 = vld [vmem:[#allocation2 + $0x28] sm:$0xff]
    %v28 = vld [vmem:[#allocation2 + $0x30] sm:$0xff]
    %v29 = vld [vmem:[#allocation2 + $0x38] sm:$0xf]
    %v30 = vld [vmem:[#allocation2 + $0x40] sm:$0xff]
    %v31 = vld [vmem:[#allocation2 + $0x48] sm:$0xff]
    %v32 = vld [vmem:[#allocation2 + $0x50] sm:$0xff]
    %v33 = vld [vmem:[#allocation2 + $0x58] sm:$0xf]
    %v34 = vld [vmem:[#allocation2 + $0x60] sm:$0xff]
    %v35 = vld [vmem:[#allocation2 + $0x68] sm:$0xff]
    %v36 = vld [vmem:[#allocation2 + $0x70] sm:$0xff]
    %v37 = vld [vmem:[#allocation2 + $0x78] sm:$0xf]
    %v38 = vld [vmem:[#allocation2 + $0x80] sm:$0xff]
    %v39 = vld [vmem:[#allocation2 + $0x88] sm:$0xff]
    %v40 = vld [vmem:[#allocation2 + $0x90] sm:$0xff]
    %v41 = vld [vmem:[#allocation2 + $0x98] sm:$0xf]
    %v42 = vld [vmem:[#allocation2 + $0xa0] sm:$0xff]
    %v43 = vld [vmem:[#allocation2 + $0xa8] sm:$0xff]
    %v44 = vld [vmem:[#allocation2 + $0xb0] sm:$0xff]
    %v45 = vld [vmem:[#allocation2 + $0xb8] sm:$0xf]
    %v46 = vld [vmem:[#allocation2 + $0xc0] sm:$0xff]
    %v47 = vld [vmem:[#allocation2 + $0xc8] sm:$0xff]
    %v48 = vld [vmem:[#allocation2 + $0xd0] sm:$0xff]
    %v49 = vld [vmem:[#allocation2 + $0xd8] sm:$0xf]
    %v50 = vld [vmem:[#allocation2 + $0xe0] sm:$0xff]
    %v51 = vld [vmem:[#allocation2 + $0xe8] sm:$0xff]
    %v52 = vld [vmem:[#allocation2 + $0xf0] sm:$0xff]
    %v53 = vld [vmem:[#allocation2 + $0xf8] sm:$0xf]
    %vm54 = vcmask 228352
    %55 = vst.msk [vmem:[%s1] sm:$0xff] %vm54, %v22
    %56 = vst.msk [vmem:[%s1 + $0x8] sm:$0xff] %vm54, %v23
    %57 = vst.msk [vmem:[%s1 + $0x10] sm:$0xff] %vm54, %v24
    %vm58 = vcmask 224256
    %59 = vst.msk [vmem:[%s1 + $0x18] sm:$0xf] %vm58, %v25
    %60 = vst.msk [vmem:[%s1 + $0x20] sm:$0xff] %vm54, %v26
    %61 = vst.msk [vmem:[%s1 + $0x28] sm:$0xff] %vm54, %v27
    %62 = vst.msk [vmem:[%s1 + $0x30] sm:$0xff] %vm54, %v28
    %63 = vst.msk [vmem:[%s1 + $0x38] sm:$0xf] %vm58, %v29
    %64 = vst.msk [vmem:[%s1 + $0x40] sm:$0xff] %vm54, %v30
    %65 = vst.msk [vmem:[%s1 + $0x48] sm:$0xff] %vm54, %v31
    %66 = vst.msk [vmem:[%s1 + $0x50] sm:$0xff] %vm54, %v32
    %67 = vst.msk [vmem:[%s1 + $0x58] sm:$0xf] %vm58, %v33
    %68 = vst.msk [vmem:[%s1 + $0x60] sm:$0xff] %vm54, %v34
    %69 = vst.msk [vmem:[%s1 + $0x68] sm:$0xff] %vm54, %v35
    %70 = vst.msk [vmem:[%s1 + $0x70] sm:$0xff] %vm54, %v36
    %71 = vst.msk [vmem:[%s1 + $0x78] sm:$0xf] %vm58, %v37
    %72 = vst.msk [vmem:[%s1 + $0x80] sm:$0xff] %vm54, %v38
    %73 = vst.msk [vmem:[%s1 + $0x88] sm:$0xff] %vm54, %v39
    %74 = vst.msk [vmem:[%s1 + $0x90] sm:$0xff] %vm54, %v40
    %75 = vst.msk [vmem:[%s1 + $0x98] sm:$0xf] %vm58, %v41
    %76 = vst.msk [vmem:[%s1 + $0xa0] sm:$0xff] %vm54, %v42
    %77 = vst.msk [vmem:[%s1 + $0xa8] sm:$0xff] %vm54, %v43
    %78 = vst.msk [vmem:[%s1 + $0xb0] sm:$0xff] %vm54, %v44
    %79 = vst.msk [vmem:[%s1 + $0xb8] sm:$0xf] %vm58, %v45
    %80 = vst.msk [vmem:[%s1 + $0xc0] sm:$0xff] %vm54, %v46
    %81 = vst.msk [vmem:[%s1 + $0xc8] sm:$0xff] %vm54, %v47
    %82 = vst.msk [vmem:[%s1 + $0xd0] sm:$0xff] %vm54, %v48
    %83 = vst.msk [vmem:[%s1 + $0xd8] sm:$0xf] %vm58, %v49
    %84 = vst.msk [vmem:[%s1 + $0xe0] sm:$0xff] %vm54, %v50
    %85 = vst.msk [vmem:[%s1 + $0xe8] sm:$0xff] %vm54, %v51
    %86 = vst.msk [vmem:[%s1 + $0xf0] sm:$0xff] %vm54, %v52
    %87 = vst.msk [vmem:[%s1 + $0xf8] sm:$0xf] %vm58, %v53
    // Predicated region
    $region10: #{tpu_custom_call.1} parent=1 // pred_check
      _
    $region11: #{tpu_custom_call.1} parent=1 // pred_check_branch
      %89 = sbr.rel (0) target = $region13
    $region12: #{tpu_custom_call.1} parent=1 // pred_region
      _
    $region13: #{tpu_custom_call.1} parent=1 // pred_fallthru
      _
    // Predicated region
    $region14: #{tpu_custom_call.1} parent=1 // pred_check
      _
    $region15: #{tpu_custom_call.1} parent=1 // pred_check_branch
      %91 = sbr.rel (0) target = $region17
    $region16: #{tpu_custom_call.1} parent=1 // pred_region
      _
    $region17: #{tpu_custom_call.1} parent=1 // pred_fallthru
      _
    %92 = vsyncpa [#allocation3], 1

</llo_original>
